<compile_context>
chip_gen: v7x
topology: tpu7x:2x2x1
jax: 0.10.0
libtpu: 0.0.40
codegen_flags: <defaults>
</compile_context>

<pallas_src>
import functools

import jax
import jax.numpy as jnp
from jax import lax
from jax.experimental import pallas as pl
from jax.experimental.pallas import tpu as pltpu


def _round_up(x, m):
    return ((x + m - 1) // m) * m


def _row_tile(m, tm_max):
    """Row-tile size: multiple of 8 sublanes, <= tm_max, >=2 grid steps when possible."""
    if m <= 16:
        return m
    if m <= tm_max:
        # Split small row extents in two so v7x's two TensorCores both get work.
        return min(m, _round_up(pl.cdiv(m, 2), 8))
    return tm_max


def _vmem_limit_bytes():
    # Raise the scoped-VMEM limit above the 16/32 MiB defaults, but stay well
    # under physical VMEM (64 MiB on v7x, 128 MiB on v5e/v6e).  Falls back to
    # the compiler default if hardware info is unavailable.
    try:
        cap = pltpu.get_tpu_info().vmem_capacity_bytes
        return min(96 * 1024 * 1024, (3 * cap) // 4)
    except Exception:  # pragma: no cover - conservative fallback
        return None


def _fused_matmul_kernel(a_ref, b_ref, *rest, act, k_dim, tk, has_w):
    if has_w:
        w_ref, o_ref, acc_ref = rest
    else:
        w_ref = None
        o_ref, acc_ref = rest

    k = pl.program_id(1)

    @pl.when(k == 0)
    def _():
        acc_ref[...] = jnp.zeros_like(acc_ref)

    a = a_ref[...]
    # Feed the MXU both operands in `a`'s dtype (bf16 adjacency -> native bf16
    # path with f32 accumulation; for the f32 feature matmul this is a no-op).
    b = b_ref[...].astype(a.dtype)

    if k_dim % tk != 0:
        # Last contraction block is partially out of bounds; OOB data is
        # undefined, so zero both operands' invalid slices before the MXU.
        base = k * tk
        col_ids = base + lax.broadcasted_iota(jnp.int32, a.shape, 1)
        a = jnp.where(col_ids < k_dim, a, jnp.zeros_like(a))
        row_ids = base + lax.broadcasted_iota(jnp.int32, b.shape, 0)
        b = jnp.where(row_ids < k_dim, b, jnp.zeros_like(b))

    acc_ref[...] += jnp.dot(a, b, preferred_element_type=jnp.float32)

    @pl.when(k == pl.num_programs(1) - 1)
    def _():
        r = acc_ref[...]
        if has_w:
            # Next layer's weight folded into the epilogue (keeps the narrow
            # intermediate in VMEM instead of round-tripping HBM).
            r = jnp.dot(r, w_ref[...], preferred_element_type=jnp.float32)
        if act == "tanh":
            r = jnp.tanh(r)  # EUP
        o_ref[...] = r.astype(o_ref.dtype)


def fused_matmul(a, b, w=None, act=None, *, tm_max=512, tk_max=2048):
    """out = act((a @ b) [@ w]); row tiles `a`, tiles the contraction, f32 accum."""
    M, K = a.shape
    Kb, Ns = b.shape
    assert K == Kb
    Nout = w.shape[1] if w is not None else Ns
    if w is not None:
        assert w.shape[0] == Ns

    tm = _row_tile(M, tm_max)                     # multiple of 8 (or full M)
    tk = K if K <= tk_max else tk_max             # full K or multiple of 128
    grid = (pl.cdiv(M, tm), pl.cdiv(K, tk))       # reduction axis last

    in_specs = [
        pl.BlockSpec((tm, tk), lambda i, k: (i, k)),   # row/col tile of a
        pl.BlockSpec((tk, Ns), lambda i, k: (k, 0)),   # matching rows of b
    ]
    args = [a, b]
    if w is not None:
        in_specs.append(pl.BlockSpec((Ns, Nout), lambda i, k: (0, 0)))  # resident
        args.append(w)

    kernel = functools.partial(_fused_matmul_kernel, act=act, k_dim=K, tk=tk,
                               has_w=w is not None)
    return pl.pallas_call(
        kernel,
        out_shape=jax.ShapeDtypeStruct((M, Nout), jnp.float32),
        grid=grid,
        in_specs=in_specs,
        out_specs=pl.BlockSpec((tm, Nout), lambda i, k: (i, 0)),
        scratch_shapes=[pltpu.VMEM((tm, Ns), jnp.float32)],
        compiler_params=pltpu.CompilerParams(
            dimension_semantics=("parallel", "arbitrary"),
            vmem_limit_bytes=_vmem_limit_bytes(),
        ),
    )(*args)


def _gram_sigmoid_kernel(zr_ref, zc_ref, o_ref):
    # o = sigmoid(z_rows @ z_cols.T): contract the shared feature dim directly
    # (no in-kernel transpose / relayout).
    g = lax.dot_general(zr_ref[...], zc_ref[...], (((1,), (1,)), ((), ())),
                        preferred_element_type=jnp.float32)
    # sigmoid(x) = 0.5 * tanh(0.5 x) + 0.5 : one EUP op, result in [0, 1].
    o_ref[...] = (0.5 * jnp.tanh(0.5 * g) + 0.5).astype(o_ref.dtype)


def gram_sigmoid(z, *, tm_max=512, tn_max=256):
    """sigmoid(z @ z.T) with 2-D output tiling (store-bound N x N output)."""
    M, D = z.shape
    tm = _row_tile(M, tm_max)
    tn = M if M <= tn_max else tn_max             # full M or multiple of 128
    grid = (pl.cdiv(M, tm), pl.cdiv(M, tn))
    return pl.pallas_call(
        _gram_sigmoid_kernel,
        out_shape=jax.ShapeDtypeStruct((M, M), jnp.float32),
        grid=grid,
        in_specs=[pl.BlockSpec((tm, D), lambda i, j: (i, 0)),
                  pl.BlockSpec((tn, D), lambda i, j: (j, 0))],
        out_specs=pl.BlockSpec((tm, tn), lambda i, j: (i, j)),
        compiler_params=pltpu.CompilerParams(
            dimension_semantics=("parallel", "parallel"),
            vmem_limit_bytes=_vmem_limit_bytes(),
        ),
    )(z, z)


def igae_encoder(x, adj, w1, w2, w3, *, adj_dtype=jnp.bfloat16):
    """IGAE encoder forward.  adj is a dense adjacency (spmm == mm)."""
    # TODO(synk): nn.Dropout is an identity at inference; training-mode dropout
    # masks are not implemented here.
    adj_c = adj.astype(adj_dtype)   # N x N read 3x -> bf16 halves HBM traffic
    # s1 = tanh(x @ W1)
    s = fused_matmul(x, w1, act="tanh")
    # s2 = tanh((adj @ s1) @ W2)   == tanh(z1 @ W2)
    s = fused_matmul(adj_c, s, w=w2, act="tanh")
    # s3 = (adj @ s2) @ W3         == z2 @ W3
    s = fused_matmul(adj_c, s, w=w3, act=None)
    # z_igae = adj @ s3
    z_igae = fused_matmul(adj_c, s, act=None)
    # z_adj = sigmoid(z_igae @ z_igae.T)
    z_adj = gram_sigmoid(z_igae)
    return z_igae, z_adj


def igae_encoder_ref(x, adj, w1, w2, w3):
    # Pure-JAX reference mirroring the PyTorch f32 forward (HIGHEST precision).
    hp = lax.Precision.HIGHEST
    z = jnp.dot(adj, jnp.tanh(jnp.dot(x, w1, precision=hp)), precision=hp)
    z = jnp.dot(adj, jnp.tanh(jnp.dot(z, w2, precision=hp)), precision=hp)
    z_igae = jnp.dot(adj, jnp.dot(z, w3, precision=hp), precision=hp)
    z_igae_adj = jax.nn.sigmoid(jnp.dot(z_igae, z_igae.T, precision=hp))
    return z_igae, z_igae_adj


if __name__ == "__main__":
    key = jax.random.PRNGKey(0)
    kx, ka, k1, k2, k3 = jax.random.split(key, 5)

    # Small shapes: 64 nodes, n_input=32, gae_n_enc_1=32, gae_n_enc_2=16, n_z=8.
    n_nodes, n_input, enc1, enc2, n_z = 64, 32, 32, 16, 8

    x = jax.random.normal(kx, (n_nodes, n_input), dtype=jnp.float32)

    # Synthetic symmetric row-normalized dense adjacency with self-loops.
    a = (jax.random.uniform(ka, (n_nodes, n_nodes)) < 0.1).astype(jnp.float32)
    a = jnp.maximum(a, a.T) + jnp.eye(n_nodes, dtype=jnp.float32)
    adj = a / jnp.sum(a, axis=1, keepdims=True)

    def xavier(k, shape):
        bound = (6.0 / (shape[0] + shape[1])) ** 0.5
        return jax.random.uniform(k, shape, jnp.float32, -bound, bound)

    w1 = xavier(k1, (n_input, enc1))
    w2 = xavier(k2, (enc1, enc2))
    w3 = xavier(k3, (enc2, n_z))

    z_igae, z_adj = igae_encoder(x, adj, w1, w2, w3)
    z_igae = jax.block_until_ready(z_igae)
    z_adj = jax.block_until_ready(z_adj)

    z_igae_ref, z_adj_ref = igae_encoder_ref(x, adj, w1, w2, w3)
    assert z_igae.shape == (n_nodes, n_z)
    assert z_adj.shape == (n_nodes, n_nodes)
    # Tolerance covers the bf16 adjacency cast (dominant HBM-traffic saving)
    # plus MXU f32-pass rounding; the f32-HIGHEST reference keeps the semantics
    # of the original PyTorch f32 forward.
    assert jnp.allclose(z_igae, z_igae_ref, atol=2e-2, rtol=2e-2), "z_igae mismatch"
    assert jnp.allclose(z_adj, z_adj_ref, atol=2e-2, rtol=2e-2), "z_igae_adj mismatch"
    assert bool(jnp.all((z_adj >= 0.0) & (z_adj <= 1.0))), "sigmoid range violated"

    print("KERNEL_OK")
</pallas_src>

<mosaic_0001>
module attributes {stable_mosaic.version = 11 : i64} {
  func.func @_fused_matmul_kernel(%arg0: i32, %arg1: i32, %arg2: memref<32x32xf32, #tpu.memory_space<vmem>>, %arg3: memref<32x32xf32, #tpu.memory_space<vmem>>, %arg4: memref<32x32xf32, #tpu.memory_space<vmem>>, %arg5: memref<32x32xf32, #tpu.memory_space<vmem>>) attributes {dimension_semantics = [#tpu.dimension_semantics<parallel>, #tpu.dimension_semantics<arbitrary>], iteration_bounds = array<i64: 2, 1>, scalar_prefetch = 0 : i64, scratch_operands = 1 : i64, tpu.core_type = #tpu.core_type<tc>, window_params = [{transform_indices = @transform_0, window_bounds = array<i64: 32, 32>}, {transform_indices = @transform_1, window_bounds = array<i64: 32, 32>}, {transform_indices = @transform_2, window_bounds = array<i64: 32, 32>}]} {
    %c0_i32 = arith.constant 0 : i32
    %0 = arith.cmpi eq, %arg1, %c0_i32 : i32
    %1 = arith.extui %0 : i1 to i32
    %c0_i32_0 = arith.constant 0 : i32
    %2 = arith.cmpi ne, %1, %c0_i32_0 : i32
    scf.if %2 {
      %cst_10 = arith.constant 0.000000e+00 : f32
      %12 = vector.broadcast %cst_10 : f32 to vector<32x32xf32>
      %c0_11 = arith.constant 0 : index
      %c0_12 = arith.constant 0 : index
      %13 = vector.load %arg5[%c0_11, %c0_12] : memref<32x32xf32, #tpu.memory_space<vmem>>, vector<32x32xf32>
      tpu.vector_store %arg5[%c0_11, %c0_12], %12 {strides = array<i32>} : memref<32x32xf32, #tpu.memory_space<vmem>>, vector<32x32xf32>,
    } else {
    }
    %c0 = arith.constant 0 : index
    %c0_1 = arith.constant 0 : index
    %3 = vector.load %arg2[%c0, %c0_1] : memref<32x32xf32, #tpu.memory_space<vmem>>, vector<32x32xf32>
    %c0_2 = arith.constant 0 : index
    %c0_3 = arith.constant 0 : index
    %4 = vector.load %arg3[%c0_2, %c0_3] : memref<32x32xf32, #tpu.memory_space<vmem>>, vector<32x32xf32>
    %c0_4 = arith.constant 0 : index
    %c0_5 = arith.constant 0 : index
    %5 = vector.load %arg5[%c0_4, %c0_5] : memref<32x32xf32, #tpu.memory_space<vmem>>, vector<32x32xf32>
    %cst = arith.constant dense<0.000000e+00> : vector<32x32xf32>
    %6 = tpu.matmul %3, %4, %cst {dimension_numbers = #tpu.dot_dimension_numbers<[1], [0], [0], [1], [0, 0, 1, 1], [], []>} : vector<32x32xf32>, vector<32x32xf32>, vector<32x32xf32> -> vector<32x32xf32>
    %7 = arith.addf %5, %6 : vector<32x32xf32>
    %c0_6 = arith.constant 0 : index
    %c0_7 = arith.constant 0 : index
    %8 = vector.load %arg5[%c0_6, %c0_7] : memref<32x32xf32, #tpu.memory_space<vmem>>, vector<32x32xf32>
    tpu.vector_store %arg5[%c0_6, %c0_7], %7 {strides = array<i32>} : memref<32x32xf32, #tpu.memory_space<vmem>>, vector<32x32xf32>,
    %c0_i32_8 = arith.constant 0 : i32
    %9 = arith.cmpi eq, %arg1, %c0_i32_8 : i32
    %10 = arith.extui %9 : i1 to i32
    %c0_i32_9 = arith.constant 0 : i32
    %11 = arith.cmpi ne, %10, %c0_i32_9 : i32
    scf.if %11 {
      %c0_10 = arith.constant 0 : index
      %c0_11 = arith.constant 0 : index
      %12 = vector.load %arg5[%c0_10, %c0_11] : memref<32x32xf32, #tpu.memory_space<vmem>>, vector<32x32xf32>
      %13 = math.tanh %12 : vector<32x32xf32>
      %c0_12 = arith.constant 0 : index
      %c0_13 = arith.constant 0 : index
      %14 = vector.load %arg4[%c0_12, %c0_13] : memref<32x32xf32, #tpu.memory_space<vmem>>, vector<32x32xf32>
      tpu.vector_store %arg4[%c0_12, %c0_13], %13 {strides = array<i32>} : memref<32x32xf32, #tpu.memory_space<vmem>>, vector<32x32xf32>,
    } else {
    }
    return
  }
  func.func @transform_0(%arg0: i32, %arg1: i32) -> (i32, i32) {
    %c0_i32 = arith.constant 0 : i32
    return %arg0, %arg1 : i32, i32
  }
  func.func @transform_1(%arg0: i32, %arg1: i32) -> (i32, i32) {
    %c0_i32 = arith.constant 0 : i32
    %c0_i32_0 = arith.constant 0 : i32
    return %arg1, %c0_i32 : i32, i32
  }
  func.func @transform_2(%arg0: i32, %arg1: i32) -> (i32, i32) {
    %c0_i32 = arith.constant 0 : i32
    %c0_i32_0 = arith.constant 0 : i32
    return %arg0, %c0_i32 : i32, i32
  }
}

</mosaic_0001>

<llo_original>
// kernel: tpu_custom_call.1
$region0: #{tpu_custom_call.1}
  #allocation0 [shape = 'u32[]', space=smem, size = 0x4, offset = 0x4, fixed_abs, tag = 'smem constant byte address 0x4 - core index']
  #allocation1 [shape = 'u32[144,128]{1,0:T(1,128)}', space=vmem, size = 0x12000, scoped, tag = 'internal scratch']
  #allocation2 [shape = 'f32[32,32]{1,0:T(8,128)}', space=vmem, size = 0x4000, scoped, tag = 'scratch operand']
  %s0 = inlined_call_operand.vmem [shape: f32[64,32], index: 0, kind: input, shape index: {}]
  %s1 = inlined_call_operand.vmem [shape: f32[32,32], index: 1, kind: input, shape index: {}]
  %s2 = inlined_call_operand.vmem [shape: f32[64,32], index: 2, kind: output, shape index: {}]
  %s3 = sld [smem:[#allocation0]]
  $region49: #{tpu_custom_call.1} parent=0
    _
  %s5 = ssub.s32 1, %s3
  %s6 = scalar_select 0, %s5, %s3
  loop: start=0, step=1, limit=4
  $region2: #{tpu_custom_call.1} parent=0 // loop_pre_header
    _
  $region3: #{tpu_custom_call.1} parent=0 // loop_header
    %s8 = sphi 0, %s12
    %p9 = scmp.ge.s32.totalorder %s8, 4
    %s15 = sphi 0, %s27
    %s16 = sphi 0, %s23
    %s17 = sphi 0, %s15
    %s18 = sphi 0, %s16
    %s19 = sphi 0, %s17
    %s20 = sphi 0, %s18
    %s32 = sphi 0, %s34
    %s35 = sphi 0, %s32
    %s36 = sphi 0, %s35
    %s52 = sphi 0, %s36
    %s58 = sphi 0, %s60
    %s61 = sphi 0, %s58
    %s62 = sphi 0, %s61
    %s78 = sphi 0, %s62
    %s84 = sphi 0, %s86
    %s87 = sphi 0, %s84
    %s88 = sphi 0, %s87
    %s104 = sphi 0, %s88
  $region4: #{tpu_custom_call.1} parent=0 // loop_header_branch
    %11 = sbr.rel (%p9) target = $region8
  $region5: #{tpu_custom_call.1} parent=0 // loop_body
    %s13 = ssub.s32 %s8, 1
    %s14 = ssub.s32 %s8, 2
    %s21 = sadd.s32 1, %s16
    %p22 = scmp.ge.s32.totalorder %s21, 1
    %s23 = scalar_select %p22, 0, %s21
    %s24 = sadd.s32 1, %s15
    %s25 = scalar_select %p22, %s24, %s15
    %p26 = scmp.ge.s32.totalorder %s25, 2
    %s27 = scalar_select %p26, 0, %s25
    %s28 = ssub.s32 %s15, %s27
    %s29 = ssub.s32 %s16, %s23
    %s30 = sor.u32 %s28, %s29
    %p31 = scmp.eq.s32.totalorder %s30, 0
    %s33 = sadd.s32 %s32, 1
    %s34 = scalar_select %p31, %s32, %s33
    %p37 = pneg %p31
    %p38 = scmp.eq.s32.totalorder %s8, 1
    %p39 = por %p37, %p38
    %p40 = scmp.ne.s32.totalorder %s32, %s35
    %p41 = scmp.eq.s32.totalorder %s8, 0
    %p42 = por %p40, %p41
    %p43 = scmp.ne.s32.totalorder %s32, %s35
    %p44 = scmp.eq.s32.totalorder %s13, 1
    %p45 = por %p43, %p44
    %p46 = scmp.ne.s32.totalorder %s35, %s36
    %p47 = scmp.eq.s32.totalorder %s13, 0
    %p48 = por %p46, %p47
    %p49 = scmp.ne.s32.totalorder %s35, %s36
    %p50 = scmp.eq.s32.totalorder %s14, 1
    %p51 = por %p49, %p50
    %p53 = scmp.ne.s32.totalorder %s36, %s52
    %p54 = scmp.eq.s32.totalorder %s14, 0
    %p55 = por %p53, %p54
    %s56 = ssub.s32 %s16, %s23
    %p57 = scmp.eq.s32.totalorder %s56, 0
    %s59 = sadd.s32 %s58, 1
    %s60 = scalar_select %p57, %s58, %s59
    %p63 = pneg %p57
    %p64 = scmp.eq.s32.totalorder %s8, 1
    %p65 = por %p63, %p64
    %p66 = scmp.ne.s32.totalorder %s58, %s61
    %p67 = scmp.eq.s32.totalorder %s8, 0
    %p68 = por %p66, %p67
    %p69 = scmp.ne.s32.totalorder %s58, %s61
    %p70 = scmp.eq.s32.totalorder %s13, 1
    %p71 = por %p69, %p70
    %p72 = scmp.ne.s32.totalorder %s61, %s62
    %p73 = scmp.eq.s32.totalorder %s13, 0
    %p74 = por %p72, %p73
    %p75 = scmp.ne.s32.totalorder %s61, %s62
    %p76 = scmp.eq.s32.totalorder %s14, 1
    %p77 = por %p75, %p76
    %p79 = scmp.ne.s32.totalorder %s62, %s78
    %p80 = scmp.eq.s32.totalorder %s14, 0
    %p81 = por %p79, %p80
    %s82 = ssub.s32 %s15, %s27
    %p83 = scmp.eq.s32.totalorder %s82, 0
    %s85 = sadd.s32 %s84, 1
    %s86 = scalar_select %p83, %s84, %s85
    %p89 = pneg %p83
    %p90 = scmp.eq.s32.totalorder %s8, 1
    %p91 = por %p89, %p90
    %p92 = scmp.ne.s32.totalorder %s84, %s87
    %p93 = scmp.eq.s32.totalorder %s8, 0
    %p94 = por %p92, %p93
    %p95 = scmp.ne.s32.totalorder %s84, %s87
    %p96 = scmp.eq.s32.totalorder %s13, 1
    %p97 = por %p95, %p96
    %p98 = scmp.ne.s32.totalorder %s87, %s88
    %p99 = scmp.eq.s32.totalorder %s13, 0
    %p100 = por %p98, %p99
    %p101 = scmp.ne.s32.totalorder %s87, %s88
    %p102 = scmp.eq.s32.totalorder %s14, 1
    %p103 = por %p101, %p102
    %p105 = scmp.ne.s32.totalorder %s88, %s104
    %p106 = scmp.eq.s32.totalorder %s14, 0
    %p107 = por %p105, %p106
    %p108 = scmp.le.s32.totalorder 1, %s8
    %p109 = scmp.lt.s32.totalorder %s8, 3
    %p110 = pnand %p108, %p109
    %p111 = pneg %p110
    // Predicated region
    $region9: #{tpu_custom_call.1} parent=5 // pred_check
      _
    $region10: #{tpu_custom_call.1} parent=5 // pred_check_branch
      %113 = sbr.rel (%p110) target = $region12
    $region11: #{tpu_custom_call.1} parent=5 // pred_region
      %s114 = ssub.s32 %s8, 1
      // Predicated region
      $region13: #{tpu_custom_call.1} parent=11 // pred_check
        %p115 = pneg %p74
      $region14: #{tpu_custom_call.1} parent=11 // pred_check_branch
        %117 = sbr.rel (%p115) target = $region16
      $region15: #{tpu_custom_call.1} parent=11 // pred_region
        %s118 = smul.u32 4, %s18
        %p119 = scmp.lt.s32.totalorder %s118, 3
        %s120 = scalar_select %p119, %s118, 3
        %s121 = smul.addr %s120, 8
        %s122 = scalar_lea.vmem %s1, %s121
        %s123 = smul.u32 4, %s18
      $region16: #{tpu_custom_call.1} parent=11 // pred_fallthru
        _
    $region12: #{tpu_custom_call.1} parent=5 // pred_fallthru
      _
    %p124 = scmp.lt.s32.totalorder %s8, 2
    // Predicated region
    $region17: #{tpu_custom_call.1} parent=5 // pred_check
      %p125 = pneg %p124
    $region18: #{tpu_custom_call.1} parent=5 // pred_check_branch
      %127 = sbr.rel (%p125) target = $region20
    $region19: #{tpu_custom_call.1} parent=5 // pred_region
      // Predicated region
      $region21: #{tpu_custom_call.1} parent=19 // pred_check
        %p128 = pneg %p42
      $region22: #{tpu_custom_call.1} parent=19 // pred_check_branch
        %130 = sbr.rel (%p128) target = $region24
      $region23: #{tpu_custom_call.1} parent=19 // pred_region
        %s131 = smul.u32 4, %s15
        %p132 = scmp.lt.s32.totalorder %s131, 7
        %s133 = scalar_select %p132, %s131, 7
        %p134 = scmp.lt.s32.totalorder %s16, 0
        %s135 = scalar_select %p134, %s16, 0
        %s136 = sadd.s32 %s135, %s133
        %s137 = smul.addr %s136, 8
        %s138 = scalar_lea.vmem %s0, %s137
        %s139 = smul.u32 4, %s15
      $region24: #{tpu_custom_call.1} parent=19 // pred_fallthru
        _
    $region20: #{tpu_custom_call.1} parent=5 // pred_fallthru
      _
    %p140 = scmp.le.s32.totalorder 1, %s8
    %p141 = scmp.lt.s32.totalorder %s8, 3
    %p142 = pnand %p140, %p141
    %p143 = pneg %p142
    // Predicated region
    $region25: #{tpu_custom_call.1} parent=5 // pred_check
      _
    $region26: #{tpu_custom_call.1} parent=5 // pred_check_branch
      %145 = sbr.rel (%p142) target = $region28
    $region27: #{tpu_custom_call.1} parent=5 // pred_region
      %s146 = ssub.s32 %s8, 1
      %s147 = smul.u32 4, %s17
      %p148 = scmp.lt.s32.totalorder %s147, 7
      %s149 = scalar_select %p148, %s147, 7
      %p150 = scmp.lt.s32.totalorder %s18, 0
      %s151 = scalar_select %p150, %s18, 0
      %s152 = sadd.s32 %s151, %s149
      %s153 = smul.addr %s152, 8
      %s154 = scalar_lea.vmem %s0, %s153
      %p155 = pneg %p48
      %p156 = pneg %p45
      %s157 = smul.u32 4, %s18
      %p158 = scmp.lt.s32.totalorder %s157, 3
      %s159 = scalar_select %p158, %s157, 3
      %s160 = smul.addr %s159, 8
      %s161 = scalar_lea.vmem %s1, %s160
      %p162 = pneg %p74
      %p163 = pneg %p71
      %p164 = pneg %p100
      %p165 = pneg %p97
      %s166 = smul.u32 4, %s17
      %p167 = scmp.lt.s32.totalorder %s166, 7
      %s168 = scalar_select %p167, %s166, 7
      %s169 = smul.addr %s168, 8
      %s170 = scalar_lea.vmem %s2, %s169
      %s171 = smul.u32 4, %s17
      %p172 = scmp.lt.s32.totalorder %s171, 7
      %s173 = scalar_select %p172, %s171, 7
      %p174 = scmp.lt.s32.totalorder %s18, 0
      %s175 = scalar_select %p174, %s18, 0
      %s176 = sadd.s32 %s175, %s173
      %s177 = smul.addr %s176, 8
      %s178 = scalar_lea.vmem %s0, %s177
      %s179 = smul.u32 4, %s17
      %s180 = smul.u32 4, %s18
      %p181 = scmp.lt.s32.totalorder %s180, 3
      %s182 = scalar_select %p181, %s180, 3
      %s183 = smul.addr %s182, 8
      %s184 = scalar_lea.vmem %s1, %s183
      %s185 = smul.u32 4, %s18
      %s186 = smul.u32 4, %s17
      %p187 = scmp.lt.s32.totalorder %s186, 7
      %s188 = scalar_select %p187, %s186, 7
      %s189 = smul.addr %s188, 8
      %s190 = scalar_lea.vmem %s2, %s189
      %s191 = smul.u32 4, %s17
      %p192 = scmp.eq.s32.totalorder %s18, 0
      // Predicated region
      $region29: #{tpu_custom_call.1} parent=27 // pred_check
        %p193 = pneg %p192
      $region30: #{tpu_custom_call.1} parent=27 // pred_check_branch
        %195 = sbr.rel (%p193) target = $region32
      $region31: #{tpu_custom_call.1} parent=27 // pred_region
        %vm196 = vcmask 261120
        %197 = vst.msk [vmem:[#allocation2] sm:$0xff] %vm196, 0.0
        %198 = vst.msk [vmem:[#allocation2 + $0x8] sm:$0xff] %vm196, 0.0
        %199 = vst.msk [vmem:[#allocation2 + $0x10] sm:$0xff] %vm196, 0.0
        %200 = vst.msk [vmem:[#allocation2 + $0x18] sm:$0xff] %vm196, 0.0
      $region32: #{tpu_custom_call.1} parent=27 // pred_fallthru
        _
      %v201 = vld [vmem:[%s178] sm:$0xff]
      %v202 = vld [vmem:[%s178 + $0x8] sm:$0xff]
      %v203 = vld [vmem:[%s178 + $0x10] sm:$0xff]
      %v204 = vld [vmem:[%s178 + $0x18] sm:$0xff]
      %v205 = vld [vmem:[%s184] sm:$0xff]
      %v206 = vld [vmem:[%s184 + $0x8] sm:$0xff]
      %v207 = vld [vmem:[%s184 + $0x10] sm:$0xff]
      %v208 = vld [vmem:[%s184 + $0x18] sm:$0xff]
      %v209 = vld [vmem:[#allocation2] sm:$0xff]
      %v210 = vld [vmem:[#allocation2 + $0x8] sm:$0xff]
      %v211 = vld [vmem:[#allocation2 + $0x10] sm:$0xff]
      %v212 = vld [vmem:[#allocation2 + $0x18] sm:$0xff]
      %vm213 = vcmask 261120
      %v215 = vsel %vm213, %v201, 0
      %v218 = vsel %vm213, %v202, 0
      %v221 = vsel %vm213, %v203, 0
      %v224 = vsel %vm213, %v204, 0
      %226 = vmatprep.subr.mxu0 0.0
      %227 = vmatpush1.msra.mxu0 %v205
      %228 = vmatprep.subr.mxu0 0.0
      %229 = vmatpush1.msra.mxu0 %v206
      %230 = vmatprep.subr.mxu0 0.0
      %231 = vmatpush1.msra.mxu0 %v207
      %232 = vmatprep.subr.mxu0 0.0
      %233 = vmatpush1.msra.mxu0 %v208
      %234 = vmatprep.subr.mxu0 0.0
      %235 = vmatpush1.msra.mxu0 0.0
      %236 = vmatprep.subr.mxu0 0.0
      %237 = vmatpush1.msra.mxu0 0.0
      %238 = vmatprep.subr.mxu0 0.0
      %239 = vmatpush1.msra.mxu0 0.0
      %240 = vmatprep.subr.mxu0 0.0
      %241 = vmatpush1.msra.mxu0 0.0
      %242 = vmatprep.subr.mxu0 0.0
      %243 = vmatpush1.msra.mxu0 0.0
      %244 = vmatprep.subr.mxu0 0.0
      %245 = vmatpush1.msra.mxu0 0.0
      %246 = vmatprep.subr.mxu0 0.0
      %247 = vmatpush1.msra.mxu0 0.0
      %248 = vmatprep.subr.mxu0 0.0
      %249 = vmatpush1.msra.mxu0 0.0
      %250 = vmatprep.subr.mxu0 0.0
      %251 = vmatpush1.msra.mxu0 0.0
      %252 = vmatprep.subr.mxu0 0.0
      %253 = vmatpush1.msra.mxu0 0.0
      %254 = vmatprep.subr.mxu0 0.0
      %255 = vmatpush1.msra.mxu0 0.0
      %256 = vmatprep.subr.mxu0 0.0
      %257 = vmatpush1.msra.mxu0 0.0
      %258 = vmatprep.subr.mxu0 0.0
      %259 = vmatpush1.msra.mxu0 0.0
      %260 = vmatprep.subr.mxu0 0.0
      %261 = vmatpush1.msra.mxu0 0.0
      %262 = vmatprep.subr.mxu0 0.0
      %263 = vmatpush1.msra.mxu0 0.0
      %264 = vmatprep.subr.mxu0 0.0
      %265 = vmatpush1.msra.mxu0 0.0
      %266 = vmatprep.subr.mxu0 0.0
      %267 = vmatpush1.msra.mxu0 0.0
      %268 = vmatprep.subr.mxu0 0.0
      %269 = vmatpush1.msra.mxu0 0.0
      %270 = vmatprep.subr.mxu0 0.0
      %271 = vmatpush1.msra.mxu0 0.0
      %272 = vmatprep.subr.mxu0 0.0
      %273 = vmatpush1.msra.mxu0 0.0
      %274 = vmatprep.subr.mxu0 0.0
      %275 = vmatpush1.msra.mxu0 0.0
      %276 = vmatprep.subr.mxu0 0.0
      %277 = vmatpush1.msra.mxu0 0.0
      %278 = vmatprep.subr.mxu0 0.0
      %279 = vmatpush1.msra.mxu0 0.0
      %280 = vmatprep.subr.mxu0 0.0
      %281 = vmatpush1.msra.mxu0 0.0
      %282 = vmatprep.subr.mxu0 0.0
      %283 = vmatpush1.msra.mxu0 0.0
      %284 = vmatprep.subr.mxu0 0.0
      %285 = vmatpush1.msra.mxu0 0.0
      %286 = vmatprep.subr.mxu0 0.0
      %287 = vmatpush1.msra.mxu0 0.0
      %288 = vmatprep.subr.mxu0 0.0
      %289 = vmatpush1.msra.mxu0 0.0
      %290 = vmatprep.mubr.f32.mxu0 0.0
      %291 = vmatmul.mubr.f32.gmra.mrb[0].mxu0 %v215
      %v292 = vpop.f32.mrb[0].mxu0
      %v293 = vadd.f32 0.0, %v292
      %v294 = vpop.f32.mrb[0].mxu0
      %295 = vmatprep.mubr.f32.mxu0 0.0
      %296 = vmatmul.mubr.f32.gmra.mrb[0].mxu0 %v218
      %v297 = vpop.f32.mrb[0].mxu0
      %v298 = vadd.f32 0.0, %v297
      %v299 = vpop.f32.mrb[0].mxu0
      %300 = vmatprep.mubr.f32.mxu0 0.0
      %301 = vmatmul.mubr.f32.gmra.mrb[0].mxu0 %v221
      %v302 = vpop.f32.mrb[0].mxu0
      %v303 = vadd.f32 0.0, %v302
      %v304 = vpop.f32.mrb[0].mxu0
      %305 = vmatprep.mubr.f32.mxu0 0.0
      %306 = vmatmul.mubr.f32.gmra.mrb[0].mxu0 %v224
      %v307 = vpop.f32.mrb[0].mxu0
      %v308 = vadd.f32 0.0, %v307
      %v309 = vpop.f32.mrb[0].mxu0
      %310 = vdwg.mxu0
      %v311 = vadd.f32 %v209, %v293
      %v312 = vadd.f32 %v210, %v298
      %v313 = vadd.f32 %v211, %v303
      %v314 = vadd.f32 %v212, %v308
      %315 = vst.msk [vmem:[#allocation2] sm:$0xff] %vm213, %v311
      %316 = vst.msk [vmem:[#allocation2 + $0x8] sm:$0xff] %vm213, %v312
      %317 = vst.msk [vmem:[#allocation2 + $0x10] sm:$0xff] %vm213, %v313
      %318 = vst.msk [vmem:[#allocation2 + $0x18] sm:$0xff] %vm213, %v314
      // Predicated region
      $region33: #{tpu_custom_call.1} parent=27 // pred_check
        %p319 = pneg %p192
      $region34: #{tpu_custom_call.1} parent=27 // pred_check_branch
        %321 = sbr.rel (%p319) target = $region36
      $region35: #{tpu_custom_call.1} parent=27 // pred_region
        %v322 = vld [vmem:[#allocation2] sm:$0xff]
        %v323 = vld [vmem:[#allocation2 + $0x8] sm:$0xff]
        %v324 = vld [vmem:[#allocation2 + $0x10] sm:$0xff]
        %v325 = vld [vmem:[#allocation2 + $0x18] sm:$0xff]
        %v326 = vtanh.pop %v322
        %v327 = vtanh.pop %v323
        %v328 = vtanh.pop %v324
        %v329 = vtanh.pop %v325
        %330 = vst.msk [vmem:[%s190] sm:$0xff] %vm213, %v326
        %331 = vst.msk [vmem:[%s190 + $0x8] sm:$0xff] %vm213, %v327
        %332 = vst.msk [vmem:[%s190 + $0x10] sm:$0xff] %vm213, %v328
        %333 = vst.msk [vmem:[%s190 + $0x18] sm:$0xff] %vm213, %v329
      $region36: #{tpu_custom_call.1} parent=27 // pred_fallthru
        _
      %s334 = smul.u32 4, %s17
      %p335 = scmp.lt.s32.totalorder %s334, 7
      %s336 = scalar_select %p335, %s334, 7
      %s337 = smul.addr %s336, 8
      %s338 = scalar_lea.vmem %s2, %s337
      // Predicated region
      $region37: #{tpu_custom_call.1} parent=27 // pred_check
        %p339 = pneg %p97
      $region38: #{tpu_custom_call.1} parent=27 // pred_check_branch
        %341 = sbr.rel (%p339) target = $region40
      $region39: #{tpu_custom_call.1} parent=27 // pred_region
        %s342 = smul.u32 4, %s17
      $region40: #{tpu_custom_call.1} parent=27 // pred_fallthru
        _
    $region28: #{tpu_custom_call.1} parent=5 // pred_fallthru
      _
    %p343 = scmp.le.s32.totalorder 2, %s8
    // Predicated region
    $region41: #{tpu_custom_call.1} parent=5 // pred_check
      %p344 = pneg %p343
    $region42: #{tpu_custom_call.1} parent=5 // pred_check_branch
      %346 = sbr.rel (%p344) target = $region44
    $region43: #{tpu_custom_call.1} parent=5 // pred_region
      %s347 = ssub.s32 %s8, 2
      // Predicated region
      $region45: #{tpu_custom_call.1} parent=43 // pred_check
        %p348 = pneg %p103
      $region46: #{tpu_custom_call.1} parent=43 // pred_check_branch
        %350 = sbr.rel (%p348) target = $region48
      $region47: #{tpu_custom_call.1} parent=43 // pred_region
        %s351 = smul.u32 4, %s19
        %p352 = scmp.lt.s32.totalorder %s351, 7
        %s353 = scalar_select %p352, %s351, 7
        %s354 = smul.addr %s353, 8
        %s355 = scalar_lea.vmem %s2, %s354
      $region48: #{tpu_custom_call.1} parent=43 // pred_fallthru
        _
    $region44: #{tpu_custom_call.1} parent=5 // pred_fallthru
      _
  $region6: #{tpu_custom_call.1} parent=0 // loop_footer
    %s12 = sadd.s32 1, %s8
  $region7: #{tpu_custom_call.1} parent=0 // loop_footer_branch
    %7 = sbr.rel target = $region3
  $region8: #{tpu_custom_call.1} parent=0 // loop_exit
    _

</llo_original>
